<compile_context>
chip_gen: v7x
topology: tpu7x:2x2x1
jax: 0.10.0
libtpu: 0.0.40
codegen_flags: <defaults>
</compile_context>

<pallas_src>
import functools

import jax
import jax.numpy as jnp
from jax.experimental import pallas as pl
from jax.experimental.pallas import tpu as pltpu


def _round_up(n: int, m: int) -> int:
    return ((n + m - 1) // m) * m


def _inner_product_kernel(x_ref, out_ref, *, num_fields, pairs):
    """x_ref: (F, D, TB) batch-on-lanes tile; out_ref: (F+P, TB) lane-dense."""
    F = num_fields

    # Hoisted: load + upcast each field exactly once (not once per pair).
    fields = [x_ref[f].astype(jnp.float32) for f in range(F)]      # each (D, TB)

    # Store batching: flush groups of 8 rows (full f32 sublane set) with one
    # aligned store instead of per-row masked stores.
    pending = []
    state = {"row": 0}

    def _flush():
        n = len(pending)
        if n == 0:
            return
        r0 = state["row"]
        out_ref[r0 : r0 + n, :] = jnp.concatenate(pending, axis=0).astype(
            out_ref.dtype
        )
        state["row"] = r0 + n
        pending.clear()

    def _emit(row):
        pending.append(row)
        if len(pending) == 8:
            _flush()

    # First-order terms z_f = sum_d x[f, d, :].
    for f in range(F):
        _emit(jnp.sum(fields[f], axis=0, keepdims=True))           # (1, TB)

    # Pairwise inner products <x_i, x_j>, i < j.
    # TODO(synk): for large F (P in the hundreds) switch to lax.fori_loop over
    # an SMEM pair table with a small inner unroll to bound live ranges, and
    # consider offloading the D reduction to the MXU via a block-diag ones mat.
    for (i, j) in pairs:
        _emit(jnp.sum(fields[i] * fields[j], axis=0, keepdims=True))

    _flush()


def inner_product(x, num_fields, require_logits=True, block_b=2048):
    """Pallas implementation of InnerProduct.forward (require_logits=True)."""
    B, F, D = x.shape
    assert F == num_fields
    if not require_logits:
        # TODO(synk): require_logits=False path (flatten(p*q, start_dim=1)) not implemented.
        raise NotImplementedError("require_logits=False path not implemented")

    pairs = [(i, j) for i in range(F - 1) for j in range(i + 1, F)]
    P = len(pairs)

    itemsize = jnp.dtype(x.dtype).itemsize
    lanes_bytes = itemsize * (F * D + F + P)   # in + out bytes per batch lane

    # Batch lives on the lane axis -> tile must be a multiple of 128 lanes.
    Bp = _round_up(B, 128)
    tb = min(max(128, _round_up(block_b, 128)), Bp)
    # Prefer >= 2 grid steps so both v7x TensorCores get work.
    if tb >= Bp and Bp >= 256:
        tb = _round_up(-(-Bp // 2), 128)
    # Cap double-buffered (in + out, 2x headroom) footprint for v7x's 64 MiB
    # VMEM (32 MiB scoped default elsewhere).
    budget = 48 * 2**20
    while tb > 128 and 4 * tb * lanes_bytes > budget:
        tb -= 128

    grid = pl.cdiv(Bp, tb)
    vmem_limit = int(min(64 * 2**20, max(32 * 2**20, 4 * tb * lanes_bytes)))

    # Layout plumbing in the wrapper (plain XLA): (B, F, D) -> (F, D, Bp).
    xt = jnp.transpose(x, (1, 2, 0))
    if Bp != B:
        xt = jnp.pad(xt, ((0, 0), (0, 0), (0, Bp - B)))

    kernel = functools.partial(_inner_product_kernel, num_fields=F, pairs=pairs)

    out_t = pl.pallas_call(
        kernel,
        out_shape=jax.ShapeDtypeStruct((F + P, Bp), x.dtype),
        grid_spec=pltpu.PrefetchScalarGridSpec(
            num_scalar_prefetch=0,
            grid=(grid,),
            in_specs=[pl.BlockSpec((F, D, tb), lambda b: (0, 0, b))],
            out_specs=pl.BlockSpec((F + P, tb), lambda b: (0, b)),
        ),
        compiler_params=pltpu.CompilerParams(
            dimension_semantics=("parallel",),
            vmem_limit_bytes=vmem_limit,
        ),
    )(xt)

    # (F+P, Bp) -> (B, F+P)
    return jnp.transpose(out_t, (1, 0))[:B]


if __name__ == "__main__":
    key = jax.random.PRNGKey(0)
    B, F, D = 2, 4, 8  # batch, num fields, embedding_dim

    wkey, xkey = jax.random.split(key)
    # Deterministic init mirroring __init__: F x F parameters of shape (D,).
    # (Unused in forward, exactly as in the PyTorch module.)
    inner_weights = jax.random.normal(wkey, (F, F, D), dtype=jnp.float32)

    x = jax.random.normal(xkey, (B, F, D), dtype=jnp.float32)

    out = inner_product(x, num_fields=F, require_logits=True)
    out = jax.block_until_ready(out)

    # Plain-JAX reference for correctness.
    z_ref = jnp.sum(x, axis=-1)
    rows, cols = [], []
    for i in range(F - 1):
        for j in range(i + 1, F):
            rows.append(i)
            cols.append(j)
    p = x[:, jnp.array(rows), :]
    q = x[:, jnp.array(cols), :]
    inner_ref = jnp.sum(p * q, axis=-1)
    ref = jnp.concatenate([z_ref, inner_ref], axis=1)

    assert out.shape == (B, F + len(rows)), out.shape
    assert jnp.allclose(out, ref, atol=1e-5, rtol=1e-5), (out, ref)
    print("KERNEL_OK")
</pallas_src>

<mosaic_0001>
module attributes {stable_mosaic.version = 11 : i64} {
  func.func @_inner_product_kernel(%arg0: i32, %arg1: memref<4x8x128xf32, #tpu.memory_space<vmem>>, %arg2: memref<10x128xf32, #tpu.memory_space<vmem>>) attributes {dimension_semantics = [#tpu.dimension_semantics<parallel>], iteration_bounds = array<i64: 1>, scalar_prefetch = 0 : i64, scratch_operands = 0 : i64, tpu.core_type = #tpu.core_type<tc>, window_params = [{transform_indices = @transform_0, window_bounds = array<i64: 4, 8, 128>}, {transform_indices = @transform_1, window_bounds = array<i64: 10, 128>}]} {
    %c0 = arith.constant 0 : index
    %c0_0 = arith.constant 0 : index
    %c0_1 = arith.constant 0 : index
    %0 = vector.load %arg1[%c0, %c0_0, %c0_1] : memref<4x8x128xf32, #tpu.memory_space<vmem>>, vector<1x8x128xf32>
    %1 = vector.shape_cast %0 : vector<1x8x128xf32> to vector<8x128xf32>
    %c1 = arith.constant 1 : index
    %c0_2 = arith.constant 0 : index
    %c0_3 = arith.constant 0 : index
    %2 = vector.load %arg1[%c1, %c0_2, %c0_3] : memref<4x8x128xf32, #tpu.memory_space<vmem>>, vector<1x8x128xf32>
    %3 = vector.shape_cast %2 : vector<1x8x128xf32> to vector<8x128xf32>
    %c2 = arith.constant 2 : index
    %c0_4 = arith.constant 0 : index
    %c0_5 = arith.constant 0 : index
    %4 = vector.load %arg1[%c2, %c0_4, %c0_5] : memref<4x8x128xf32, #tpu.memory_space<vmem>>, vector<1x8x128xf32>
    %5 = vector.shape_cast %4 : vector<1x8x128xf32> to vector<8x128xf32>
    %c3 = arith.constant 3 : index
    %c0_6 = arith.constant 0 : index
    %c0_7 = arith.constant 0 : index
    %6 = vector.load %arg1[%c3, %c0_6, %c0_7] : memref<4x8x128xf32, #tpu.memory_space<vmem>>, vector<1x8x128xf32>
    %7 = vector.shape_cast %6 : vector<1x8x128xf32> to vector<8x128xf32>
    %cst = arith.constant dense<0.000000e+00> : vector<128xf32>
    %8 = vector.multi_reduction <add>, %1, %cst [0] : vector<8x128xf32> to vector<128xf32>
    %9 = vector.shape_cast %8 : vector<128xf32> to vector<1x128xf32>
    %cst_8 = arith.constant dense<0.000000e+00> : vector<128xf32>
    %10 = vector.multi_reduction <add>, %3, %cst_8 [0] : vector<8x128xf32> to vector<128xf32>
    %11 = vector.shape_cast %10 : vector<128xf32> to vector<1x128xf32>
    %cst_9 = arith.constant dense<0.000000e+00> : vector<128xf32>
    %12 = vector.multi_reduction <add>, %5, %cst_9 [0] : vector<8x128xf32> to vector<128xf32>
    %13 = vector.shape_cast %12 : vector<128xf32> to vector<1x128xf32>
    %cst_10 = arith.constant dense<0.000000e+00> : vector<128xf32>
    %14 = vector.multi_reduction <add>, %7, %cst_10 [0] : vector<8x128xf32> to vector<128xf32>
    %15 = vector.shape_cast %14 : vector<128xf32> to vector<1x128xf32>
    %16 = arith.mulf %1, %3 : vector<8x128xf32>
    %cst_11 = arith.constant dense<0.000000e+00> : vector<128xf32>
    %17 = vector.multi_reduction <add>, %16, %cst_11 [0] : vector<8x128xf32> to vector<128xf32>
    %18 = vector.shape_cast %17 : vector<128xf32> to vector<1x128xf32>
    %19 = arith.mulf %1, %5 : vector<8x128xf32>
    %cst_12 = arith.constant dense<0.000000e+00> : vector<128xf32>
    %20 = vector.multi_reduction <add>, %19, %cst_12 [0] : vector<8x128xf32> to vector<128xf32>
    %21 = vector.shape_cast %20 : vector<128xf32> to vector<1x128xf32>
    %22 = arith.mulf %1, %7 : vector<8x128xf32>
    %cst_13 = arith.constant dense<0.000000e+00> : vector<128xf32>
    %23 = vector.multi_reduction <add>, %22, %cst_13 [0] : vector<8x128xf32> to vector<128xf32>
    %24 = vector.shape_cast %23 : vector<128xf32> to vector<1x128xf32>
    %25 = arith.mulf %3, %5 : vector<8x128xf32>
    %cst_14 = arith.constant dense<0.000000e+00> : vector<128xf32>
    %26 = vector.multi_reduction <add>, %25, %cst_14 [0] : vector<8x128xf32> to vector<128xf32>
    %27 = vector.shape_cast %26 : vector<128xf32> to vector<1x128xf32>
    %28 = tpu.concatenate %9, %11, %13, %15, %18, %21, %24, %27 in 0 : vector<1x128xf32>, vector<1x128xf32>, vector<1x128xf32>, vector<1x128xf32>, vector<1x128xf32>, vector<1x128xf32>, vector<1x128xf32>, vector<1x128xf32> -> vector<8x128xf32>
    %c0_15 = arith.constant 0 : index
    %c0_16 = arith.constant 0 : index
    %29 = vector.load %arg2[%c0_15, %c0_16] : memref<10x128xf32, #tpu.memory_space<vmem>>, vector<8x128xf32>
    tpu.vector_store %arg2[%c0_15, %c0_16], %28 {strides = array<i32>} : memref<10x128xf32, #tpu.memory_space<vmem>>, vector<8x128xf32>,
    %30 = arith.mulf %3, %7 : vector<8x128xf32>
    %cst_17 = arith.constant dense<0.000000e+00> : vector<128xf32>
    %31 = vector.multi_reduction <add>, %30, %cst_17 [0] : vector<8x128xf32> to vector<128xf32>
    %32 = vector.shape_cast %31 : vector<128xf32> to vector<1x128xf32>
    %33 = arith.mulf %5, %7 : vector<8x128xf32>
    %cst_18 = arith.constant dense<0.000000e+00> : vector<128xf32>
    %34 = vector.multi_reduction <add>, %33, %cst_18 [0] : vector<8x128xf32> to vector<128xf32>
    %35 = vector.shape_cast %34 : vector<128xf32> to vector<1x128xf32>
    %36 = tpu.concatenate %32, %35 in 0 : vector<1x128xf32>, vector<1x128xf32> -> vector<2x128xf32>
    %c8 = arith.constant 8 : index
    %c0_19 = arith.constant 0 : index
    %37 = vector.load %arg2[%c8, %c0_19] : memref<10x128xf32, #tpu.memory_space<vmem>>, vector<2x128xf32>
    tpu.vector_store %arg2[%c8, %c0_19], %36 {strides = array<i32>} : memref<10x128xf32, #tpu.memory_space<vmem>>, vector<2x128xf32>,
    return
  }
  func.func @transform_0(%arg0: i32) -> (i32, i32, i32) {
    %c0_i32 = arith.constant 0 : i32
    %c0_i32_0 = arith.constant 0 : i32
    %c0_i32_1 = arith.constant 0 : i32
    return %c0_i32, %c0_i32_0, %arg0 : i32, i32, i32
  }
  func.func @transform_1(%arg0: i32) -> (i32, i32) {
    %c0_i32 = arith.constant 0 : i32
    %c0_i32_0 = arith.constant 0 : i32
    return %c0_i32, %arg0 : i32, i32
  }
}

</mosaic_0001>

<llo_original>
// kernel: tpu_custom_call.1
$region0: #{tpu_custom_call.1}
  #allocation0 [shape = 'u32[]', space=smem, size = 0x4, offset = 0x4, fixed_abs, tag = 'smem constant byte address 0x4 - core index']
  #allocation1 [shape = 'u32[144,128]{1,0:T(1,128)}', space=vmem, size = 0x12000, scoped, tag = 'internal scratch']
  %s0 = inlined_call_operand.hbm [shape: f32[4,8,128], index: 0, kind: input, shape index: {}]
  %s1 = inlined_call_operand.hbm [shape: f32[10,128], index: 1, kind: output, shape index: {}]
  %s2 = sld [smem:[#allocation0]]
  $region18: #{tpu_custom_call.1} parent=0
    _
  %s4 = ssub.s32 1, %s2
  %s5 = scalar_select 0, %s4, %s2
  $region1: #{tpu_custom_call.1} parent=0
    #allocation2 [shape = 'u8[16384]{0}', space=vmem, size = 0x4000, scoped, tag = 'input window, operand 0, single buffered']
    #allocation3 [shape = 's32[1]{0}', space=sflag, size = 0x4, scoped, tag = 'scoped memory for tpu_custom_call.1']
    #allocation4 [shape = 's32[1]{0}', space=sflag, size = 0x4, scoped, tag = 'scoped memory for tpu_custom_call.1']
    #allocation5 [shape = 'u8[8192]{0}', space=vmem, size = 0x2000, scoped, tag = 'output window, operand 0, single buffered']
    %6 = vsyncpa [#allocation3], 0
    %7 = vsyncpa [#allocation4], 0
    // Predicated region
    $region2: #{tpu_custom_call.1} parent=1 // pred_check
      _
    $region3: #{tpu_custom_call.1} parent=1 // pred_check_branch
      %9 = sbr.rel (0) target = $region5
    $region4: #{tpu_custom_call.1} parent=1 // pred_region
      %s11 = ssub.s32 512, 512
      %12 = vsyncadd [#allocation3], %s11
      %s13 = sshll.u32 [#allocation2], 4
      %s14 = int_to_ptr.vmem [resolvable:$true] %s13
      %19 = dma.hbm_to_vmem [thread:$0]  %s0, 512, %s14, [#allocation3], 128, 128, 8
    $region5: #{tpu_custom_call.1} parent=1 // pred_fallthru
      _
    // Predicated region
    $region6: #{tpu_custom_call.1} parent=1 // pred_check
      _
    $region7: #{tpu_custom_call.1} parent=1 // pred_check_branch
      %21 = sbr.rel (0) target = $region9
    $region8: #{tpu_custom_call.1} parent=1 // pred_region
      %22 = dma.done [#allocation3], 512
    $region9: #{tpu_custom_call.1} parent=1 // pred_fallthru
      _
    %v23 = vld [vmem:[#allocation2] sm:$0xff]
    %s24 = scalar_lea.vmem [#allocation2], 8
    %v25 = vld [vmem:[%s24] sm:$0xff]
    %s26 = scalar_lea.vmem [#allocation2], 16
    %v27 = vld [vmem:[%s26] sm:$0xff]
    %s28 = scalar_lea.vmem [#allocation2], 24
    %v29 = vld [vmem:[%s28] sm:$0xff]
    %v30 = vrot.slane %v23, 4
    %v31 = vadd.f32 %v23, %v30
    %v32 = vrot.slane %v31, 2
    %v33 = vadd.f32 %v31, %v32
    %v34 = vrot.slane %v33, 1
    %v35 = vadd.f32 %v33, %v34
    %v36 = vrot.slane %v25, 4
    %v37 = vadd.f32 %v25, %v36
    %v38 = vrot.slane %v37, 2
    %v39 = vadd.f32 %v37, %v38
    %v40 = vrot.slane %v39, 1
    %v41 = vadd.f32 %v39, %v40
    %v42 = vrot.slane %v27, 4
    %v43 = vadd.f32 %v27, %v42
    %v44 = vrot.slane %v43, 2
    %v45 = vadd.f32 %v43, %v44
    %v46 = vrot.slane %v45, 1
    %v47 = vadd.f32 %v45, %v46
    %v48 = vrot.slane %v29, 4
    %v49 = vadd.f32 %v29, %v48
    %v50 = vrot.slane %v49, 2
    %v51 = vadd.f32 %v49, %v50
    %v52 = vrot.slane %v51, 1
    %v53 = vadd.f32 %v51, %v52
    %v54 = vmul.f32 %v23, %v25
    %v55 = vrot.slane %v54, 4
    %v56 = vadd.f32 %v54, %v55
    %v57 = vrot.slane %v56, 2
    %v58 = vadd.f32 %v56, %v57
    %v59 = vrot.slane %v58, 1
    %v60 = vadd.f32 %v58, %v59
    %v61 = vmul.f32 %v23, %v27
    %v62 = vrot.slane %v61, 4
    %v63 = vadd.f32 %v61, %v62
    %v64 = vrot.slane %v63, 2
    %v65 = vadd.f32 %v63, %v64
    %v66 = vrot.slane %v65, 1
    %v67 = vadd.f32 %v65, %v66
    %v68 = vmul.f32 %v23, %v29
    %v69 = vrot.slane %v68, 4
    %v70 = vadd.f32 %v68, %v69
    %v71 = vrot.slane %v70, 2
    %v72 = vadd.f32 %v70, %v71
    %v73 = vrot.slane %v72, 1
    %v74 = vadd.f32 %v72, %v73
    %v75 = vmul.f32 %v25, %v27
    %v76 = vrot.slane %v75, 4
    %v77 = vadd.f32 %v75, %v76
    %v78 = vrot.slane %v77, 2
    %v79 = vadd.f32 %v77, %v78
    %v80 = vrot.slane %v79, 1
    %v81 = vadd.f32 %v79, %v80
    %vm82 = vcmask 1040384
    %v83 = vsel %vm82, %v35, %v41
    %vm84 = vcmask 1041408
    %v85 = vsel %vm84, %v83, %v47
    %vm86 = vcmask 1042432
    %v87 = vsel %vm86, %v85, %v53
    %vm88 = vcmask 1043456
    %v89 = vsel %vm88, %v87, %v60
    %vm90 = vcmask 1044480
    %v91 = vsel %vm90, %v89, %v67
    %vm92 = vcmask 1045504
    %v93 = vsel %vm92, %v91, %v74
    %vm94 = vcmask 1046528
    %v95 = vsel %vm94, %v93, %v81
    %96 = vst [vmem:[#allocation5] sm:$0xff] %v95
    %v97 = vmul.f32 %v25, %v29
    %v98 = vrot.slane %v97, 4
    %v99 = vadd.f32 %v97, %v98
    %v100 = vrot.slane %v99, 2
    %v101 = vadd.f32 %v99, %v100
    %v102 = vrot.slane %v101, 1
    %v103 = vadd.f32 %v101, %v102
    %v104 = vmul.f32 %v27, %v29
    %v105 = vrot.slane %v104, 4
    %v106 = vadd.f32 %v104, %v105
    %v107 = vrot.slane %v106, 2
    %v108 = vadd.f32 %v106, %v107
    %v109 = vrot.slane %v108, 1
    %v110 = vadd.f32 %v108, %v109
    %v111 = vsel %vm82, %v103, %v110
    %112 = vst [vmem:[#allocation5 + $0x8] sm:$0x3] %v111
    // Predicated region
    $region10: #{tpu_custom_call.1} parent=1 // pred_check
      _
    $region11: #{tpu_custom_call.1} parent=1 // pred_check_branch
      %114 = sbr.rel (0) target = $region13
    $region12: #{tpu_custom_call.1} parent=1 // pred_region
      %s116 = ssub.s32 256, 256
      %117 = vsyncadd [#allocation4], %s116
      %s118 = sshll.u32 [#allocation5], 4
      %s119 = int_to_ptr.vmem [resolvable:$true] %s118
      %124 = dma.vmem_to_hbm [thread:$0]  %s119, 256, %s1, [#allocation4], 128, 128, 8
    $region13: #{tpu_custom_call.1} parent=1 // pred_fallthru
      _
    // Predicated region
    $region14: #{tpu_custom_call.1} parent=1 // pred_check
      _
    $region15: #{tpu_custom_call.1} parent=1 // pred_check_branch
      %126 = sbr.rel (0) target = $region17
    $region16: #{tpu_custom_call.1} parent=1 // pred_region
      %127 = dma.done [#allocation4], 256
    $region17: #{tpu_custom_call.1} parent=1 // pred_fallthru
      _
    %128 = vsyncpa [#allocation3], 1
    %129 = vsyncpa [#allocation4], 1

</llo_original>
